<compile_context>
chip_gen: v6e
topology: v6e:2x2x1
jax: 0.10.0
libtpu: 0.0.40
codegen_flags: <defaults>
</compile_context>

<pallas_src>
import jax
import jax.numpy as jnp
from jax.experimental import pallas as pl
from jax.experimental.pallas import tpu as pltpu


def rfm_kernel(x_ref, w1_ref, w2_ref, p_ref, o_ref):
    """x_ref: (B, D) f32.  w1_ref/w2_ref: (D, D) bf16, pre-transposed to
    (in, out).  p_ref: (8, D) f32 packed params
    [b1, b2, g1, be1, g2, be2, g3, be3].  o_ref: (B, D)."""
    eps = 1e-5
    inv_b = 1.0 / x_ref.shape[0]

    def batchnorm(h, gamma, beta):
        # Training-mode BN, fused: two independent reductions (no serialized
        # mean -> (h-mean)^2 -> mean chain), then a single broadcast FMA.
        mean = jnp.sum(h, axis=0, keepdims=True) * inv_b
        mean_sq = jnp.sum(h * h, axis=0, keepdims=True) * inv_b
        var = mean_sq - mean * mean            # biased batch variance
        scale = jax.lax.rsqrt(var + eps) * gamma   # rsqrt -> EUP slot
        shift = beta - mean * scale
        return h * scale + shift

    # Packed per-feature params (single (8, D) tile).
    b1 = p_ref[0:1, :]
    b2 = p_ref[1:2, :]
    g1, be1 = p_ref[2:3, :], p_ref[3:4, :]
    g2, be2 = p_ref[4:5, :], p_ref[5:6, :]
    g3, be3 = p_ref[6:7, :], p_ref[7:8, :]

    x = x_ref[...]  # already f32

    # BN1
    h = batchnorm(x, g1, be1)
    # Linear1 on the MXU: bf16 operands, f32 accumulate.
    h = jnp.dot(h.astype(jnp.bfloat16), w1_ref[...],
                preferred_element_type=jnp.float32) + b1
    # BN2 + ReLU
    h = jnp.maximum(batchnorm(h, g2, be2), 0.0)
    # Linear2 on the MXU
    h = jnp.dot(h.astype(jnp.bfloat16), w2_ref[...],
                preferred_element_type=jnp.float32) + b2
    # BN3 + ReLU
    h = jnp.maximum(batchnorm(h, g3, be3), 0.0)

    o_ref[...] = h.astype(o_ref.dtype)


def rfm_forward(x, w1_t, b1, w2_t, b2, g1, be1, g2, be2, g3, be3):
    """x: (B, D) float32.  Linear weights already transposed to (D_in, D_out).
    Per-feature params are shaped (1, D)."""
    B, D = x.shape
    # Pack all nine (1, D) vectors into one (8, D) array -> single DMA/tile.
    params = jnp.concatenate(
        [b1, b2, g1, be1, g2, be2, g3, be3], axis=0).astype(jnp.float32)
    # Feed the MXU bf16 weights (halves weight DMA bytes, bf16-native MXU).
    w1_bf = w1_t.astype(jnp.bfloat16)
    w2_bf = w2_t.astype(jnp.bfloat16)

    vmem = pl.BlockSpec(memory_space=pltpu.MemorySpace.VMEM)
    return pl.pallas_call(
        rfm_kernel,
        out_shape=jax.ShapeDtypeStruct((B, D), x.dtype),
        in_specs=[vmem] * 4,
        out_specs=vmem,
    )(x, w1_bf, w2_bf, params)


def rfm_reference(x, w1_t, b1, w2_t, b2, g1, be1, g2, be2, g3, be3):
    """Pure-JAX reference with two-pass BN variance and the same MXU numerics
    (bf16 matmul operands, f32 accumulation) as the kernel."""
    eps = 1e-5

    def bn(h, g, b):
        m = jnp.mean(h, axis=0, keepdims=True)
        v = jnp.mean((h - m) ** 2, axis=0, keepdims=True)
        return (h - m) / jnp.sqrt(v + eps) * g + b

    def mm(h, w):
        return jnp.dot(h.astype(jnp.bfloat16), w.astype(jnp.bfloat16),
                       preferred_element_type=jnp.float32)

    h = bn(x, g1, be1)
    h = mm(h, w1_t) + b1
    h = jnp.maximum(bn(h, g2, be2), 0.0)
    h = mm(h, w2_t) + b2
    h = jnp.maximum(bn(h, g3, be3), 0.0)
    return h


if __name__ == "__main__":
    # Lane-dense small shapes: D = 128 (full vreg lane width, unmasked stores),
    # B = 16 (sublane-aligned).
    B, D = 16, 128
    key = jax.random.PRNGKey(0)
    kx, kw1, kb1, kw2, kb2 = jax.random.split(key, 5)

    x = jax.random.normal(kx, (B, D), dtype=jnp.float32)

    # nn.Linear init: uniform(-1/sqrt(D), 1/sqrt(D)); PyTorch stores (out, in),
    # we pass the transpose (in, out) to the kernel.
    bound = 1.0 / (D ** 0.5)
    w1 = jax.random.uniform(kw1, (D, D), jnp.float32, -bound, bound)  # (out, in)
    b1 = jax.random.uniform(kb1, (1, D), jnp.float32, -bound, bound)
    w2 = jax.random.uniform(kw2, (D, D), jnp.float32, -bound, bound)  # (out, in)
    b2 = jax.random.uniform(kb2, (1, D), jnp.float32, -bound, bound)
    w1_t = w1.T
    w2_t = w2.T

    # BatchNorm1d default affine init: gamma=1, beta=0.
    ones = jnp.ones((1, D), jnp.float32)
    zeros = jnp.zeros((1, D), jnp.float32)
    g1, be1 = ones, zeros
    g2, be2 = ones, zeros
    g3, be3 = ones, zeros

    out = rfm_forward(x, w1_t, b1, w2_t, b2, g1, be1, g2, be2, g3, be3)
    out = jax.block_until_ready(out)

    ref = rfm_reference(x, w1_t, b1, w2_t, b2, g1, be1, g2, be2, g3, be3)
    assert out.shape == (B, D)
    # Tolerance covers accumulation-order differences and the one-pass
    # (E[x^2]-E[x]^2) vs two-pass variance form.
    assert jnp.allclose(out, ref, atol=2e-3, rtol=2e-3), "mismatch vs reference"

    print("KERNEL_OK")
</pallas_src>

<mosaic_0001>
module attributes {stable_mosaic.version = 11 : i64} {
  func.func @rfm_kernel(%arg0: memref<16x128xf32, #tpu.memory_space<vmem>>, %arg1: memref<128x128xbf16, #tpu.memory_space<vmem>>, %arg2: memref<128x128xbf16, #tpu.memory_space<vmem>>, %arg3: memref<8x128xf32, #tpu.memory_space<vmem>>, %arg4: memref<16x128xf32, #tpu.memory_space<vmem>>) attributes {dimension_semantics = [], scalar_prefetch = 0 : i64, scratch_operands = 0 : i64, tpu.core_type = #tpu.core_type<tc>} {
    %c0 = arith.constant 0 : index
    %c0_0 = arith.constant 0 : index
    %0 = vector.load %arg3[%c0, %c0_0] : memref<8x128xf32, #tpu.memory_space<vmem>>, vector<1x128xf32>
    %c1 = arith.constant 1 : index
    %c0_1 = arith.constant 0 : index
    %1 = vector.load %arg3[%c1, %c0_1] : memref<8x128xf32, #tpu.memory_space<vmem>>, vector<1x128xf32>
    %c2 = arith.constant 2 : index
    %c0_2 = arith.constant 0 : index
    %2 = vector.load %arg3[%c2, %c0_2] : memref<8x128xf32, #tpu.memory_space<vmem>>, vector<1x128xf32>
    %c3 = arith.constant 3 : index
    %c0_3 = arith.constant 0 : index
    %3 = vector.load %arg3[%c3, %c0_3] : memref<8x128xf32, #tpu.memory_space<vmem>>, vector<1x128xf32>
    %c4 = arith.constant 4 : index
    %c0_4 = arith.constant 0 : index
    %4 = vector.load %arg3[%c4, %c0_4] : memref<8x128xf32, #tpu.memory_space<vmem>>, vector<1x128xf32>
    %c5 = arith.constant 5 : index
    %c0_5 = arith.constant 0 : index
    %5 = vector.load %arg3[%c5, %c0_5] : memref<8x128xf32, #tpu.memory_space<vmem>>, vector<1x128xf32>
    %c6 = arith.constant 6 : index
    %c0_6 = arith.constant 0 : index
    %6 = vector.load %arg3[%c6, %c0_6] : memref<8x128xf32, #tpu.memory_space<vmem>>, vector<1x128xf32>
    %c7 = arith.constant 7 : index
    %c0_7 = arith.constant 0 : index
    %7 = vector.load %arg3[%c7, %c0_7] : memref<8x128xf32, #tpu.memory_space<vmem>>, vector<1x128xf32>
    %c0_8 = arith.constant 0 : index
    %c0_9 = arith.constant 0 : index
    %8 = vector.load %arg0[%c0_8, %c0_9] : memref<16x128xf32, #tpu.memory_space<vmem>>, vector<16x128xf32>
    %cst = arith.constant dense<0.000000e+00> : vector<128xf32>
    %9 = vector.multi_reduction <add>, %8, %cst [0] : vector<16x128xf32> to vector<128xf32>
    %10 = vector.shape_cast %9 : vector<128xf32> to vector<1x128xf32>
    %cst_10 = arith.constant 6.250000e-02 : f32
    %11 = vector.broadcast %cst_10 : f32 to vector<1x128xf32>
    %12 = arith.mulf %10, %11 : vector<1x128xf32>
    %13 = arith.mulf %8, %8 : vector<16x128xf32>
    %cst_11 = arith.constant dense<0.000000e+00> : vector<128xf32>
    %14 = vector.multi_reduction <add>, %13, %cst_11 [0] : vector<16x128xf32> to vector<128xf32>
    %15 = vector.shape_cast %14 : vector<128xf32> to vector<1x128xf32>
    %cst_12 = arith.constant 6.250000e-02 : f32
    %16 = vector.broadcast %cst_12 : f32 to vector<1x128xf32>
    %17 = arith.mulf %15, %16 : vector<1x128xf32>
    %18 = arith.mulf %12, %12 : vector<1x128xf32>
    %19 = arith.subf %17, %18 : vector<1x128xf32>
    %cst_13 = arith.constant 9.99999974E-6 : f32
    %20 = vector.broadcast %cst_13 : f32 to vector<1x128xf32>
    %21 = arith.addf %19, %20 : vector<1x128xf32>
    %22 = math.rsqrt %21 : vector<1x128xf32>
    %23 = arith.mulf %22, %2 : vector<1x128xf32>
    %24 = arith.mulf %12, %23 : vector<1x128xf32>
    %25 = arith.subf %3, %24 : vector<1x128xf32>
    %26 = vector.broadcast %23 : vector<1x128xf32> to vector<16x128xf32>
    %27 = arith.mulf %8, %26 : vector<16x128xf32>
    %28 = vector.broadcast %25 : vector<1x128xf32> to vector<16x128xf32>
    %29 = arith.addf %27, %28 : vector<16x128xf32>
    %30 = arith.truncf %29 : vector<16x128xf32> to vector<16x128xbf16>
    %c0_14 = arith.constant 0 : index
    %c0_15 = arith.constant 0 : index
    %31 = vector.load %arg1[%c0_14, %c0_15] : memref<128x128xbf16, #tpu.memory_space<vmem>>, vector<128x128xbf16>
    %cst_16 = arith.constant dense<0.000000e+00> : vector<16x128xf32>
    %32 = tpu.matmul %30, %31, %cst_16 {dimension_numbers = #tpu.dot_dimension_numbers<[1], [0], [0], [1], [0, 0, 1, 1], [], []>} : vector<16x128xbf16>, vector<128x128xbf16>, vector<16x128xf32> -> vector<16x128xf32>
    %33 = vector.broadcast %0 : vector<1x128xf32> to vector<16x128xf32>
    %34 = arith.addf %32, %33 : vector<16x128xf32>
    %cst_17 = arith.constant dense<0.000000e+00> : vector<128xf32>
    %35 = vector.multi_reduction <add>, %34, %cst_17 [0] : vector<16x128xf32> to vector<128xf32>
    %36 = vector.shape_cast %35 : vector<128xf32> to vector<1x128xf32>
    %cst_18 = arith.constant 6.250000e-02 : f32
    %37 = vector.broadcast %cst_18 : f32 to vector<1x128xf32>
    %38 = arith.mulf %36, %37 : vector<1x128xf32>
    %39 = arith.mulf %34, %34 : vector<16x128xf32>
    %cst_19 = arith.constant dense<0.000000e+00> : vector<128xf32>
    %40 = vector.multi_reduction <add>, %39, %cst_19 [0] : vector<16x128xf32> to vector<128xf32>
    %41 = vector.shape_cast %40 : vector<128xf32> to vector<1x128xf32>
    %cst_20 = arith.constant 6.250000e-02 : f32
    %42 = vector.broadcast %cst_20 : f32 to vector<1x128xf32>
    %43 = arith.mulf %41, %42 : vector<1x128xf32>
    %44 = arith.mulf %38, %38 : vector<1x128xf32>
    %45 = arith.subf %43, %44 : vector<1x128xf32>
    %cst_21 = arith.constant 9.99999974E-6 : f32
    %46 = vector.broadcast %cst_21 : f32 to vector<1x128xf32>
    %47 = arith.addf %45, %46 : vector<1x128xf32>
    %48 = math.rsqrt %47 : vector<1x128xf32>
    %49 = arith.mulf %48, %4 : vector<1x128xf32>
    %50 = arith.mulf %38, %49 : vector<1x128xf32>
    %51 = arith.subf %5, %50 : vector<1x128xf32>
    %52 = vector.broadcast %49 : vector<1x128xf32> to vector<16x128xf32>
    %53 = arith.mulf %34, %52 : vector<16x128xf32>
    %54 = vector.broadcast %51 : vector<1x128xf32> to vector<16x128xf32>
    %55 = arith.addf %53, %54 : vector<16x128xf32>
    %cst_22 = arith.constant 0.000000e+00 : f32
    %56 = vector.broadcast %cst_22 : f32 to vector<16x128xf32>
    %57 = arith.maximumf %55, %56 : vector<16x128xf32>
    %58 = arith.truncf %57 : vector<16x128xf32> to vector<16x128xbf16>
    %c0_23 = arith.constant 0 : index
    %c0_24 = arith.constant 0 : index
    %59 = vector.load %arg2[%c0_23, %c0_24] : memref<128x128xbf16, #tpu.memory_space<vmem>>, vector<128x128xbf16>
    %cst_25 = arith.constant dense<0.000000e+00> : vector<16x128xf32>
    %60 = tpu.matmul %58, %59, %cst_25 {dimension_numbers = #tpu.dot_dimension_numbers<[1], [0], [0], [1], [0, 0, 1, 1], [], []>} : vector<16x128xbf16>, vector<128x128xbf16>, vector<16x128xf32> -> vector<16x128xf32>
    %61 = vector.broadcast %1 : vector<1x128xf32> to vector<16x128xf32>
    %62 = arith.addf %60, %61 : vector<16x128xf32>
    %cst_26 = arith.constant dense<0.000000e+00> : vector<128xf32>
    %63 = vector.multi_reduction <add>, %62, %cst_26 [0] : vector<16x128xf32> to vector<128xf32>
    %64 = vector.shape_cast %63 : vector<128xf32> to vector<1x128xf32>
    %cst_27 = arith.constant 6.250000e-02 : f32
    %65 = vector.broadcast %cst_27 : f32 to vector<1x128xf32>
    %66 = arith.mulf %64, %65 : vector<1x128xf32>
    %67 = arith.mulf %62, %62 : vector<16x128xf32>
    %cst_28 = arith.constant dense<0.000000e+00> : vector<128xf32>
    %68 = vector.multi_reduction <add>, %67, %cst_28 [0] : vector<16x128xf32> to vector<128xf32>
    %69 = vector.shape_cast %68 : vector<128xf32> to vector<1x128xf32>
    %cst_29 = arith.constant 6.250000e-02 : f32
    %70 = vector.broadcast %cst_29 : f32 to vector<1x128xf32>
    %71 = arith.mulf %69, %70 : vector<1x128xf32>
    %72 = arith.mulf %66, %66 : vector<1x128xf32>
    %73 = arith.subf %71, %72 : vector<1x128xf32>
    %cst_30 = arith.constant 9.99999974E-6 : f32
    %74 = vector.broadcast %cst_30 : f32 to vector<1x128xf32>
    %75 = arith.addf %73, %74 : vector<1x128xf32>
    %76 = math.rsqrt %75 : vector<1x128xf32>
    %77 = arith.mulf %76, %6 : vector<1x128xf32>
    %78 = arith.mulf %66, %77 : vector<1x128xf32>
    %79 = arith.subf %7, %78 : vector<1x128xf32>
    %80 = vector.broadcast %77 : vector<1x128xf32> to vector<16x128xf32>
    %81 = arith.mulf %62, %80 : vector<16x128xf32>
    %82 = vector.broadcast %79 : vector<1x128xf32> to vector<16x128xf32>
    %83 = arith.addf %81, %82 : vector<16x128xf32>
    %cst_31 = arith.constant 0.000000e+00 : f32
    %84 = vector.broadcast %cst_31 : f32 to vector<16x128xf32>
    %85 = arith.maximumf %83, %84 : vector<16x128xf32>
    %c0_32 = arith.constant 0 : index
    %c0_33 = arith.constant 0 : index
    %86 = vector.load %arg4[%c0_32, %c0_33] : memref<16x128xf32, #tpu.memory_space<vmem>>, vector<16x128xf32>
    tpu.vector_store %arg4[%c0_32, %c0_33], %85 {strides = array<i32>} : memref<16x128xf32, #tpu.memory_space<vmem>>, vector<16x128xf32>,
    return
  }
}

</mosaic_0001>

<llo_original>
// kernel: tpu_custom_call.1
$region0: #{tpu_custom_call.1}
  #allocation0 [shape = 'u32[]', space=smem, size = 0x4, offset = 0x4, fixed_abs, tag = 'smem constant byte address 0x4 - core index']
  #allocation1 [shape = 'u32[144,128]{1,0:T(1,128)}', space=vmem, size = 0x12000, scoped, tag = 'internal scratch']
  %s0 = inlined_call_operand.hbm [shape: f32[16,128], index: 0, kind: input, shape index: {}]
  %s1 = inlined_call_operand.hbm [shape: bf16[128,128], index: 1, kind: input, shape index: {}]
  %s2 = inlined_call_operand.hbm [shape: bf16[128,128], index: 2, kind: input, shape index: {}]
  %s3 = inlined_call_operand.hbm [shape: f32[8,128], index: 3, kind: input, shape index: {}]
  %s4 = inlined_call_operand.hbm [shape: f32[16,128], index: 4, kind: output, shape index: {}]
  %s5 = sld [smem:[#allocation0]]
  $region42: #{tpu_custom_call.1} parent=0
    _
  %s7 = ssub.s32 1, %s5
  %s8 = scalar_select 0, %s7, %s5
  $region1: #{tpu_custom_call.1} parent=0
    #allocation2 [shape = 'u8[8192]{0}', space=vmem, size = 0x2000, scoped, tag = 'input window, operand 0, single buffered']
    #allocation3 [shape = 's32[1]{0}', space=sflag, size = 0x4, scoped, tag = 'scoped memory for tpu_custom_call.1']
    #allocation4 [shape = 's32[1]{0}', space=sflag, size = 0x4, scoped, tag = 'scoped memory for tpu_custom_call.1']
    #allocation5 [shape = 'u8[32768]{0}', space=vmem, size = 0x8000, scoped, tag = 'input window, operand 1, single buffered']
    #allocation6 [shape = 's32[1]{0}', space=sflag, size = 0x4, scoped, tag = 'scoped memory for tpu_custom_call.1']
    #allocation7 [shape = 'u8[32768]{0}', space=vmem, size = 0x8000, scoped, tag = 'input window, operand 2, single buffered']
    #allocation8 [shape = 'u8[4096]{0}', space=vmem, size = 0x1000, scoped, tag = 'input window, operand 3, single buffered']
    #allocation9 [shape = 's32[1]{0}', space=sflag, size = 0x4, scoped, tag = 'scoped memory for tpu_custom_call.1']
    #allocation10 [shape = 'u8[8192]{0}', space=vmem, size = 0x2000, scoped, tag = 'output window, operand 0, single buffered']
    %9 = vsyncpa [#allocation3], 0
    %10 = vsyncpa [#allocation6], 0
    %11 = vsyncpa [#allocation9], 0
    %12 = vsyncpa [#allocation4], 0
    // Predicated region
    $region2: #{tpu_custom_call.1} parent=1 // pred_check
      _
    $region3: #{tpu_custom_call.1} parent=1 // pred_check_branch
      %14 = sbr.rel (0) target = $region5
    $region4: #{tpu_custom_call.1} parent=1 // pred_region
      %s16 = ssub.s32 256, 256
      %17 = vsyncadd [#allocation3], %s16
      %s18 = sshll.u32 [#allocation2], 4
      %s19 = int_to_ptr.vmem [resolvable:$true] %s18
      %24 = dma.hbm_to_vmem [thread:$0]  %s0, 256, %s19, [#allocation3], 128, 128, 8
    $region5: #{tpu_custom_call.1} parent=1 // pred_fallthru
      _
    // Predicated region
    $region6: #{tpu_custom_call.1} parent=1 // pred_check
      _
    $region7: #{tpu_custom_call.1} parent=1 // pred_check_branch
      %26 = sbr.rel (0) target = $region9
    $region8: #{tpu_custom_call.1} parent=1 // pred_region
      %s28 = ssub.s32 1024, 1024
      %29 = vsyncadd [#allocation6], %s28
      %s30 = sshll.u32 [#allocation5], 4
      %s31 = int_to_ptr.vmem [resolvable:$true] %s30
      %36 = dma.hbm_to_vmem [thread:$0]  %s1, 1024, %s31, [#allocation6], 64, 64, 4
    $region9: #{tpu_custom_call.1} parent=1 // pred_fallthru
      _
    // Predicated region
    $region10: #{tpu_custom_call.1} parent=1 // pred_check
      _
    $region11: #{tpu_custom_call.1} parent=1 // pred_check_branch
      %38 = sbr.rel (0) target = $region13
    $region12: #{tpu_custom_call.1} parent=1 // pred_region
      %s40 = ssub.s32 1024, 1024
      %41 = vsyncadd [#allocation6], %s40
      %s42 = sshll.u32 [#allocation7], 4
      %s43 = int_to_ptr.vmem [resolvable:$true] %s42
      %48 = dma.hbm_to_vmem [thread:$0]  %s2, 1024, %s43, [#allocation6], 64, 64, 4
    $region13: #{tpu_custom_call.1} parent=1 // pred_fallthru
      _
    // Predicated region
    $region14: #{tpu_custom_call.1} parent=1 // pred_check
      _
    $region15: #{tpu_custom_call.1} parent=1 // pred_check_branch
      %50 = sbr.rel (0) target = $region17
    $region16: #{tpu_custom_call.1} parent=1 // pred_region
      %s52 = ssub.s32 128, 128
      %53 = vsyncadd [#allocation9], %s52
      %s55 = sshll.u32 [#allocation8], 4
      %s56 = int_to_ptr.vmem [resolvable:$true] %s55
      %58 = dma.hbm_to_vmem [thread:$0]  %s3, 128, %s56, [#allocation9]
    $region17: #{tpu_custom_call.1} parent=1 // pred_fallthru
      _
    // Predicated region
    $region18: #{tpu_custom_call.1} parent=1 // pred_check
      _
    $region19: #{tpu_custom_call.1} parent=1 // pred_check_branch
      %60 = sbr.rel (0) target = $region21
    $region20: #{tpu_custom_call.1} parent=1 // pred_region
      %61 = dma.done [#allocation3], 256
    $region21: #{tpu_custom_call.1} parent=1 // pred_fallthru
      _
    // Predicated region
    $region22: #{tpu_custom_call.1} parent=1 // pred_check
      _
    $region23: #{tpu_custom_call.1} parent=1 // pred_check_branch
      %63 = sbr.rel (0) target = $region25
    $region24: #{tpu_custom_call.1} parent=1 // pred_region
      %64 = dma.done [#allocation6], 1024
    $region25: #{tpu_custom_call.1} parent=1 // pred_fallthru
      _
    // Predicated region
    $region26: #{tpu_custom_call.1} parent=1 // pred_check
      _
    $region27: #{tpu_custom_call.1} parent=1 // pred_check_branch
      %66 = sbr.rel (0) target = $region29
    $region28: #{tpu_custom_call.1} parent=1 // pred_region
      %67 = dma.done [#allocation6], 1024
    $region29: #{tpu_custom_call.1} parent=1 // pred_fallthru
      _
    // Predicated region
    $region30: #{tpu_custom_call.1} parent=1 // pred_check
      _
    $region31: #{tpu_custom_call.1} parent=1 // pred_check_branch
      %69 = sbr.rel (0) target = $region33
    $region32: #{tpu_custom_call.1} parent=1 // pred_region
      %70 = dma.done [#allocation9], 128
    $region33: #{tpu_custom_call.1} parent=1 // pred_fallthru
      _
    %v72 = vld [vmem:[#allocation8] sm:$0x1]
    %v73 = vld [vmem:[#allocation8 + $0x1] sm:$0x1]
    %v74 = vld [vmem:[#allocation8 + $0x2] sm:$0x1]
    %v75 = vld [vmem:[#allocation8 + $0x3] sm:$0x1]
    %v76 = vld [vmem:[#allocation8 + $0x4] sm:$0x1]
    %v77 = vld [vmem:[#allocation8 + $0x5] sm:$0x1]
    %v78 = vld [vmem:[#allocation8 + $0x6] sm:$0x1]
    %v79 = vld [vmem:[#allocation8 + $0x7] sm:$0x1]
    %v80 = vld [vmem:[#allocation2] sm:$0xff]
    %v81 = vld [vmem:[#allocation2 + $0x8] sm:$0xff]
    %v82 = vadd.f32 %v80, %v81
    %v83 = vrot.slane %v82, 4
    %v84 = vadd.f32 %v82, %v83
    %v85 = vrot.slane %v84, 2
    %v86 = vadd.f32 %v84, %v85
    %v87 = vrot.slane %v86, 1
    %v88 = vadd.f32 %v86, %v87
    %v89 = vmul.f32 %v88, 0.0625
    %v90 = vmul.f32 %v80, %v80
    %v91 = vmul.f32 %v81, %v81
    %v92 = vadd.f32 %v90, %v91
    %v93 = vrot.slane %v92, 4
    %v94 = vadd.f32 %v92, %v93
    %v95 = vrot.slane %v94, 2
    %v96 = vadd.f32 %v94, %v95
    %v97 = vrot.slane %v96, 1
    %v98 = vadd.f32 %v96, %v97
    %v99 = vmul.f32 %v98, 0.0625
    %v100 = vmul.f32 %v89, %v89
    %v101 = vsub.f32 %v99, %v100
    %v102 = vadd.f32 %v101, 1e-05
    %v103 = vrsqrt.pop %v102
    %v104 = vmul.f32 %v103, %v74
    %v105 = vmul.f32 %v89, %v104
    %v106 = vsub.f32 %v75, %v105
    %v107 = vlaneseq
    %v108 = vshrl.u32 %v107, 7
    %v109 = vsub.s32 0, %v108
    %v110 = vrot.slane %v104, %v109
    %v111 = vmul.f32 %v80, %v110
    %v112 = vmul.f32 %v81, %v110
    %v113 = vlaneseq
    %v114 = vshrl.u32 %v113, 7
    %v115 = vsub.s32 0, %v114
    %v116 = vrot.slane %v106, %v115
    %v117 = vadd.f32 %v111, %v116
    %v118 = vadd.f32 %v112, %v116
    %v119 = vpack.c.bf16 %v118, %v117
    %v120 = vld [vmem:[#allocation5] sm:$0xf]
    %v121 = vld [vmem:[#allocation5 + $0x4] sm:$0xf]
    %v122 = vld [vmem:[#allocation5 + $0x8] sm:$0xf]
    %v123 = vld [vmem:[#allocation5 + $0xc] sm:$0xf]
    %v124 = vld [vmem:[#allocation5 + $0x10] sm:$0xf]
    %v125 = vld [vmem:[#allocation5 + $0x14] sm:$0xf]
    %v126 = vld [vmem:[#allocation5 + $0x18] sm:$0xf]
    %v127 = vld [vmem:[#allocation5 + $0x1c] sm:$0xf]
    %v128 = vld [vmem:[#allocation5 + $0x20] sm:$0xf]
    %v129 = vld [vmem:[#allocation5 + $0x24] sm:$0xf]
    %v130 = vld [vmem:[#allocation5 + $0x28] sm:$0xf]
    %v131 = vld [vmem:[#allocation5 + $0x2c] sm:$0xf]
    %v132 = vld [vmem:[#allocation5 + $0x30] sm:$0xf]
    %v133 = vld [vmem:[#allocation5 + $0x34] sm:$0xf]
    %v134 = vld [vmem:[#allocation5 + $0x38] sm:$0xf]
    %v135 = vld [vmem:[#allocation5 + $0x3c] sm:$0xf]
    %v136 = vlaneseq
    %v137 = vshrl.u32 %v136, 7
    %v138 = vsub.s32 0, %v137
    %v139 = vrot.slane %v72, %v138
    %v156 = vunpack.c.l.b16 %v120
    %v157 = vunpack.c.l.b16 %v121
    %v158 = vunpack.c.l.b16 %v122
    %v159 = vunpack.c.l.b16 %v123
    %v160 = vunpack.c.l.b16 %v124
    %v161 = vunpack.c.l.b16 %v125
    %v162 = vunpack.c.l.b16 %v126
    %v163 = vunpack.c.l.b16 %v127
    %v164 = vunpack.c.l.b16 %v128
    %v165 = vunpack.c.l.b16 %v129
    %v166 = vunpack.c.l.b16 %v130
    %v167 = vunpack.c.l.b16 %v131
    %v168 = vunpack.c.l.b16 %v132
    %v169 = vunpack.c.l.b16 %v133
    %v170 = vunpack.c.l.b16 %v134
    %v171 = vunpack.c.l.b16 %v135
    %v172 = vpack.c.b16 %v157, %v156
    %v173 = vpack.c.b16 %v159, %v158
    %v174 = vpack.c.b16 %v161, %v160
    %v175 = vpack.c.b16 %v163, %v162
    %v176 = vpack.c.b16 %v165, %v164
    %v177 = vpack.c.b16 %v167, %v166
    %v178 = vpack.c.b16 %v169, %v168
    %v179 = vpack.c.b16 %v171, %v170
    %188 = vmatprep.subr.bf16.mxu0 0
    %189 = vmatpush1.bf16.msra.mxu0 %v179
    %190 = vmatprep.subr.bf16.mxu0 0
    %191 = vmatpush1.bf16.msra.mxu0 %v178
    %192 = vmatprep.subr.bf16.mxu0 0
    %193 = vmatpush1.bf16.msra.mxu0 %v177
    %194 = vmatprep.subr.bf16.mxu0 0
    %195 = vmatpush1.bf16.msra.mxu0 %v176
    %196 = vmatprep.subr.bf16.mxu0 0
    %197 = vmatpush1.bf16.msra.mxu0 %v175
    %198 = vmatprep.subr.bf16.mxu0 0
    %199 = vmatpush1.bf16.msra.mxu0 %v174
    %200 = vmatprep.subr.bf16.mxu0 0
    %201 = vmatpush1.bf16.msra.mxu0 %v173
    %202 = vmatprep.subr.bf16.mxu0 0
    %203 = vmatpush1.bf16.msra.mxu0 %v172
    %204 = vmatprep.subr.bf16.mxu0 0
    %205 = vmatpush2.bf16.msra.mxu0 0
    %206 = vmatprep.subr.bf16.mxu0 0
    %207 = vmatpush2.bf16.msra.mxu0 0
    %208 = vmatprep.subr.bf16.mxu0 0
    %209 = vmatpush2.bf16.msra.mxu0 0
    %210 = vmatprep.subr.bf16.mxu0 0
    %211 = vmatpush2.bf16.msra.mxu0 0
    %212 = vmatprep.subr.bf16.mxu0 0
    %213 = vmatpush2.bf16.msra.mxu0 0
    %214 = vmatprep.subr.bf16.mxu0 0
    %215 = vmatpush2.bf16.msra.mxu0 0
    %216 = vmatprep.subr.bf16.mxu0 0
    %217 = vmatpush2.bf16.msra.mxu0 0
    %218 = vmatprep.subr.bf16.mxu0 0
    %219 = vmatpush2.bf16.msra.mxu0 0
    %220 = vmatprep.mubr.bf16.mxu0 0
    %221 = vmatmul.mubr.bf16.gmra.mxu0 %v119
    %v222 = vpop.f32.mrf.mxu0
    %v223 = vadd.f32 %v139, %v222
    %v224 = vpop.f32.mrf.mxu0
    %v225 = vpop.f32.mrf.mxu0
    %v226 = vadd.f32 %v139, %v225
    %v227 = vpop.f32.mrf.mxu0
    %228 = vdwg.mxu0
    %v229 = vadd.f32 %v223, %v226
    %v230 = vrot.slane %v229, 4
    %v231 = vadd.f32 %v229, %v230
    %v232 = vrot.slane %v231, 2
    %v233 = vadd.f32 %v231, %v232
    %v234 = vrot.slane %v233, 1
    %v235 = vadd.f32 %v233, %v234
    %v236 = vmul.f32 %v235, 0.0625
    %v237 = vmul.f32 %v223, %v223
    %v238 = vmul.f32 %v226, %v226
    %v239 = vadd.f32 %v237, %v238
    %v240 = vrot.slane %v239, 4
    %v241 = vadd.f32 %v239, %v240
    %v242 = vrot.slane %v241, 2
    %v243 = vadd.f32 %v241, %v242
    %v244 = vrot.slane %v243, 1
    %v245 = vadd.f32 %v243, %v244
    %v246 = vmul.f32 %v245, 0.0625
    %v247 = vmul.f32 %v236, %v236
    %v248 = vsub.f32 %v246, %v247
    %v249 = vadd.f32 %v248, 1e-05
    %v250 = vrsqrt.pop %v249
    %v251 = vmul.f32 %v250, %v76
    %v252 = vmul.f32 %v236, %v251
    %v253 = vsub.f32 %v77, %v252
    %v254 = vlaneseq
    %v255 = vshrl.u32 %v254, 7
    %v256 = vsub.s32 0, %v255
    %v257 = vrot.slane %v251, %v256
    %v258 = vmul.f32 %v223, %v257
    %v259 = vmul.f32 %v226, %v257
    %v260 = vlaneseq
    %v261 = vshrl.u32 %v260, 7
    %v262 = vsub.s32 0, %v261
    %v263 = vrot.slane %v253, %v262
    %v264 = vadd.f32 %v258, %v263
    %v265 = vadd.f32 %v259, %v263
    %v266 = vmax.f32 %v264, 0.0
    %v267 = vmax.f32 %v265, 0.0
    %v268 = vpack.c.bf16 %v267, %v266
    %v269 = vld [vmem:[#allocation7] sm:$0xf]
    %v270 = vld [vmem:[#allocation7 + $0x4] sm:$0xf]
    %v271 = vld [vmem:[#allocation7 + $0x8] sm:$0xf]
    %v272 = vld [vmem:[#allocation7 + $0xc] sm:$0xf]
    %v273 = vld [vmem:[#allocation7 + $0x10] sm:$0xf]
    %v274 = vld [vmem:[#allocation7 + $0x14] sm:$0xf]
    %v275 = vld [vmem:[#allocation7 + $0x18] sm:$0xf]
    %v276 = vld [vmem:[#allocation7 + $0x1c] sm:$0xf]
    %v277 = vld [vmem:[#allocation7 + $0x20] sm:$0xf]
    %v278 = vld [vmem:[#allocation7 + $0x24] sm:$0xf]
    %v279 = vld [vmem:[#allocation7 + $0x28] sm:$0xf]
    %v280 = vld [vmem:[#allocation7 + $0x2c] sm:$0xf]
    %v281 = vld [vmem:[#allocation7 + $0x30] sm:$0xf]
    %v282 = vld [vmem:[#allocation7 + $0x34] sm:$0xf]
    %v283 = vld [vmem:[#allocation7 + $0x38] sm:$0xf]
    %v284 = vld [vmem:[#allocation7 + $0x3c] sm:$0xf]
    %v285 = vlaneseq
    %v286 = vshrl.u32 %v285, 7
    %v287 = vsub.s32 0, %v286
    %v288 = vrot.slane %v73, %v287
    %v305 = vunpack.c.l.b16 %v269
    %v306 = vunpack.c.l.b16 %v270
    %v307 = vunpack.c.l.b16 %v271
    %v308 = vunpack.c.l.b16 %v272
    %v309 = vunpack.c.l.b16 %v273
    %v310 = vunpack.c.l.b16 %v274
    %v311 = vunpack.c.l.b16 %v275
    %v312 = vunpack.c.l.b16 %v276
    %v313 = vunpack.c.l.b16 %v277
    %v314 = vunpack.c.l.b16 %v278
    %v315 = vunpack.c.l.b16 %v279
    %v316 = vunpack.c.l.b16 %v280
    %v317 = vunpack.c.l.b16 %v281
    %v318 = vunpack.c.l.b16 %v282
    %v319 = vunpack.c.l.b16 %v283
    %v320 = vunpack.c.l.b16 %v284
    %v321 = vpack.c.b16 %v306, %v305
    %v322 = vpack.c.b16 %v308, %v307
    %v323 = vpack.c.b16 %v310, %v309
    %v324 = vpack.c.b16 %v312, %v311
    %v325 = vpack.c.b16 %v314, %v313
    %v326 = vpack.c.b16 %v316, %v315
    %v327 = vpack.c.b16 %v318, %v317
    %v328 = vpack.c.b16 %v320, %v319
    %337 = vmatprep.subr.bf16.mxu0 0
    %338 = vmatpush1.bf16.msra.mxu0 %v328
    %339 = vmatprep.subr.bf16.mxu0 0
    %340 = vmatpush1.bf16.msra.mxu0 %v327
    %341 = vmatprep.subr.bf16.mxu0 0
    %342 = vmatpush1.bf16.msra.mxu0 %v326
    %343 = vmatprep.subr.bf16.mxu0 0
    %344 = vmatpush1.bf16.msra.mxu0 %v325
    %345 = vmatprep.subr.bf16.mxu0 0
    %346 = vmatpush1.bf16.msra.mxu0 %v324
    %347 = vmatprep.subr.bf16.mxu0 0
    %348 = vmatpush1.bf16.msra.mxu0 %v323
    %349 = vmatprep.subr.bf16.mxu0 0
    %350 = vmatpush1.bf16.msra.mxu0 %v322
    %351 = vmatprep.subr.bf16.mxu0 0
    %352 = vmatpush1.bf16.msra.mxu0 %v321
    %353 = vmatprep.subr.bf16.mxu0 0
    %354 = vmatpush2.bf16.msra.mxu0 0
    %355 = vmatprep.subr.bf16.mxu0 0
    %356 = vmatpush2.bf16.msra.mxu0 0
    %357 = vmatprep.subr.bf16.mxu0 0
    %358 = vmatpush2.bf16.msra.mxu0 0
    %359 = vmatprep.subr.bf16.mxu0 0
    %360 = vmatpush2.bf16.msra.mxu0 0
    %361 = vmatprep.subr.bf16.mxu0 0
    %362 = vmatpush2.bf16.msra.mxu0 0
    %363 = vmatprep.subr.bf16.mxu0 0
    %364 = vmatpush2.bf16.msra.mxu0 0
    %365 = vmatprep.subr.bf16.mxu0 0
    %366 = vmatpush2.bf16.msra.mxu0 0
    %367 = vmatprep.subr.bf16.mxu0 0
    %368 = vmatpush2.bf16.msra.mxu0 0
    %369 = vmatprep.mubr.bf16.mxu0 0
    %370 = vmatmul.mubr.bf16.gmra.mxu0 %v268
    %v371 = vpop.f32.mrf.mxu0
    %v372 = vadd.f32 %v288, %v371
    %v373 = vpop.f32.mrf.mxu0
    %v374 = vpop.f32.mrf.mxu0
    %v375 = vadd.f32 %v288, %v374
    %v376 = vpop.f32.mrf.mxu0
    %377 = vdwg.mxu0
    %v378 = vadd.f32 %v372, %v375
    %v379 = vrot.slane %v378, 4
    %v380 = vadd.f32 %v378, %v379
    %v381 = vrot.slane %v380, 2
    %v382 = vadd.f32 %v380, %v381
    %v383 = vrot.slane %v382, 1
    %v384 = vadd.f32 %v382, %v383
    %v385 = vmul.f32 %v384, 0.0625
    %v386 = vmul.f32 %v372, %v372
    %v387 = vmul.f32 %v375, %v375
    %v388 = vadd.f32 %v386, %v387
    %v389 = vrot.slane %v388, 4
    %v390 = vadd.f32 %v388, %v389
    %v391 = vrot.slane %v390, 2
    %v392 = vadd.f32 %v390, %v391
    %v393 = vrot.slane %v392, 1
    %v394 = vadd.f32 %v392, %v393
    %v395 = vmul.f32 %v394, 0.0625
    %v396 = vmul.f32 %v385, %v385
    %v397 = vsub.f32 %v395, %v396
    %v398 = vadd.f32 %v397, 1e-05
    %v399 = vrsqrt.pop %v398
    %v400 = vmul.f32 %v399, %v78
    %v401 = vmul.f32 %v385, %v400
    %v402 = vsub.f32 %v79, %v401
    %v403 = vlaneseq
    %v404 = vshrl.u32 %v403, 7
    %v405 = vsub.s32 0, %v404
    %v406 = vrot.slane %v400, %v405
    %v407 = vmul.f32 %v372, %v406
    %v408 = vmul.f32 %v375, %v406
    %v409 = vlaneseq
    %v410 = vshrl.u32 %v409, 7
    %v411 = vsub.s32 0, %v410
    %v412 = vrot.slane %v402, %v411
    %v413 = vadd.f32 %v407, %v412
    %v414 = vadd.f32 %v408, %v412
    %v415 = vmax.f32 %v413, 0.0
    %v416 = vmax.f32 %v414, 0.0
    %417 = vst [vmem:[#allocation10] sm:$0xff] %v415
    %418 = vst [vmem:[#allocation10 + $0x8] sm:$0xff] %v416
    // Predicated region
    $region34: #{tpu_custom_call.1} parent=1 // pred_check
      _
    $region35: #{tpu_custom_call.1} parent=1 // pred_check_branch
      %420 = sbr.rel (0) target = $region37
    $region36: #{tpu_custom_call.1} parent=1 // pred_region
      %s422 = ssub.s32 256, 256
      %423 = vsyncadd [#allocation4], %s422
      %s424 = sshll.u32 [#allocation10], 4
      %s425 = int_to_ptr.vmem [resolvable:$true] %s424
      %430 = dma.vmem_to_hbm [thread:$0]  %s425, 256, %s4, [#allocation4], 128, 128, 8
    $region37: #{tpu_custom_call.1} parent=1 // pred_fallthru
      _
    // Predicated region
    $region38: #{tpu_custom_call.1} parent=1 // pred_check
      _
    $region39: #{tpu_custom_call.1} parent=1 // pred_check_branch
      %432 = sbr.rel (0) target = $region41
    $region40: #{tpu_custom_call.1} parent=1 // pred_region
      %433 = dma.done [#allocation4], 256
    $region41: #{tpu_custom_call.1} parent=1 // pred_fallthru
      _
    %434 = vsyncpa [#allocation3], 1
    %435 = vsyncpa [#allocation6], 1
    %436 = vsyncpa [#allocation9], 1
    %437 = vsyncpa [#allocation4], 1

</llo_original>
